<compile_context>
chip_gen: v7x
topology: tpu7x:2x2x1
jax: 0.10.0
libtpu: 0.0.40
codegen_flags: <defaults>
</compile_context>

<pallas_src>
import functools

import jax
import jax.numpy as jnp
from jax.experimental import pallas as pl
from jax.experimental.pallas import tpu as pltpu

_LANES = 128
_ROW_ALIGN = 32                      # multiple of 8 (f32) and 16 (bf16) sublanes
_VMEM_LIMIT = 48 * 1024 * 1024       # > v5e 16 MiB default, < v7x 64 MiB physical


def _cdiv(a, b):
    return -(-a // b)


def _round_up(x, m):
    return _cdiv(x, m) * m


def gate_diff_kernel(xi_ref, xj_ref, e_ref, v_ref, w_ref, b_ref, o_ref, *,
                     mxu_bf16):
    # Elementwise hot path on the VPU in f32 regardless of storage dtype.
    xi = xi_ref[...].astype(jnp.float32)
    xj = xj_ref[...].astype(jnp.float32)
    e = e_ref[...].astype(jnp.float32)
    vv = v_ref[...].astype(jnp.float32)
    d = xj + e + vv - 2.0 * xi                        # k - q
    lr = jnp.where(d > 0, d, jnp.float32(0.01) * d)   # F.leaky_relu default slope
    # Linear on the MXU (block-diagonal packed weight), f32 accumulation.
    if mxu_bf16:
        z = jnp.dot(lr.astype(jnp.bfloat16), w_ref[...].astype(jnp.bfloat16),
                    preferred_element_type=jnp.float32)
    else:
        z = jnp.dot(lr, w_ref[...].astype(jnp.float32),
                    preferred_element_type=jnp.float32)
    z = z + b_ref[...].astype(jnp.float32)
    o_ref[...] = jnp.tanh(z).astype(o_ref.dtype)      # tanh -> EUP


def pack_gate_diff_params(weight_t, bias):
    """Prepare Linear params once (hoisted out of the per-call hot path).

    weight_t: (in_size, out_size) — Linear weight already transposed.
    Returns (w_bd, b2d): block-diagonal weight (pack*F, pack*O) and tiled bias
    (1, pack*O), where pack = 128 // F when F divides 128 (lane-dense layout).
    """
    F, O = weight_t.shape
    pack = _LANES // F if (_LANES % F == 0 and F <= _LANES) else 1
    # NOTE: if F does not divide 128, pack falls back to 1 and the lane-dense
    # layout (unmasked 128-wide stores, block-diag MXU) is lost — still correct.
    if pack == 1:
        w_bd = weight_t
    else:
        w_bd = jnp.zeros((pack * F, pack * O), weight_t.dtype)
        for i in range(pack):  # pack is small & static
            w_bd = w_bd.at[i * F:(i + 1) * F, i * O:(i + 1) * O].set(weight_t)
    b2d = jnp.tile(bias.astype(jnp.float32), pack).reshape(1, pack * O)
    return w_bd, b2d


@functools.partial(jax.jit, static_argnames=("tile_rows", "mxu_bf16"))
def gate_diff(x_i, x_j, e_ij, v, w_bd, b2d, *, tile_rows=None, mxu_bf16=True):
    """Fused Gate_Diff forward.  w_bd/b2d come from pack_gate_diff_params()."""
    N, F = x_i.shape
    FL, OL = w_bd.shape
    assert FL % F == 0
    pack = FL // F
    O = OL // pack

    out_dtype = x_i.dtype
    itemsize = jnp.dtype(out_dtype).itemsize

    # Minimal padding: only to a multiple of `pack` (<= pack-1 rows) so the
    # lane-packing reshape below is a pure row-major view.  Ragged final grid
    # blocks are handled by Pallas boundary masking — no tile-multiple padding,
    # no extra full-array HBM pass.
    Npad = _round_up(N, pack)

    def prep(a):
        if a.dtype != out_dtype:
            a = a.astype(out_dtype)
        if Npad != N:
            a = jnp.pad(a, ((0, Npad - N), (0, 0)))
        return a.reshape(Npad // pack, FL)   # free row-major view reshape

    xi_p, xj_p, e_p, v_p = prep(x_i), prep(x_j), prep(e_ij), prep(v)
    R = Npad // pack                          # packed rows

    # Row tile: ~1 MiB per stream to sit near the HBM roofline; keep >= 4 grid
    # steps when there is enough work (>= 2 per TensorCore on v7x megacore).
    cap = tile_rows if tile_rows is not None else (4096 if itemsize <= 2 else 2048)
    tile = min(cap, _round_up(R, _ROW_ALIGN))
    if R >= 4 * _ROW_ALIGN:
        tile = min(tile, _round_up(_cdiv(R, 4), _ROW_ALIGN))
    tile = max(_ROW_ALIGN, (tile // _ROW_ALIGN) * _ROW_ALIGN)
    grid = _cdiv(R, tile)

    row_spec = pl.BlockSpec((tile, FL), lambda i: (i, 0))
    cost = pl.CostEstimate(
        flops=2 * N * F * O,                 # true (non-block-diag) flop count
        transcendentals=N * O,
        bytes_accessed=(4 * N * F + N * O) * itemsize
        + FL * OL * jnp.dtype(w_bd.dtype).itemsize + OL * 4,
    )

    kernel = functools.partial(gate_diff_kernel, mxu_bf16=mxu_bf16)
    out_packed = pl.pallas_call(
        kernel,
        out_shape=jax.ShapeDtypeStruct((R, OL), out_dtype),
        grid_spec=pltpu.PrefetchScalarGridSpec(
            num_scalar_prefetch=0,
            grid=(grid,),
            in_specs=[
                row_spec,                                  # x_i  (lane-packed)
                row_spec,                                  # x_j  (lane-packed)
                row_spec,                                  # e_ij (lane-packed)
                row_spec,                                  # v    (lane-packed)
                pl.BlockSpec((FL, OL), lambda i: (0, 0)),  # block-diag weight
                pl.BlockSpec((1, OL), lambda i: (0, 0)),   # tiled bias
            ],
            out_specs=pl.BlockSpec((tile, OL), lambda i: (i, 0)),
        ),
        compiler_params=pltpu.CompilerParams(
            dimension_semantics=("parallel",),
            vmem_limit_bytes=_VMEM_LIMIT),
        cost_estimate=cost,
    )(xi_p, xj_p, e_p, v_p, w_bd, b2d)

    out = out_packed.reshape(Npad, O)
    if Npad != N:
        out = out[:N]
    return out


def gate_diff_ref(x_i, x_j, e_ij, v, weight_t, bias):
    k = x_j.astype(jnp.float32) + e_ij.astype(jnp.float32) + v.astype(jnp.float32)
    q = 2.0 * x_i.astype(jnp.float32)
    d = k - q
    lr = jnp.where(d > 0, d, 0.01 * d)
    return jnp.tanh(lr @ weight_t + bias[None, :])


if __name__ == "__main__":
    in_size, out_size = 32, 32           # k_s = 1

    key = jax.random.PRNGKey(0)
    kw, kb, kx = jax.random.split(key, 3)

    # Deterministic Linear(in_size * k_s, out_size) init (PyTorch-style uniform).
    bound = 1.0 / (in_size ** 0.5)
    weight_t = jax.random.uniform(kw, (in_size, out_size), jnp.float32, -bound, bound)
    bias = jax.random.uniform(kb, (out_size,), jnp.float32, -bound, bound)
    w_bd, b2d = pack_gate_diff_params(weight_t, bias)    # prepared once

    def make_inputs(k, n, dtype=jnp.float32):
        k1, k2, k3, k4 = jax.random.split(k, 4)
        mk = lambda kk: jax.random.normal(kk, (n, in_size), jnp.float32).astype(dtype)
        return mk(k1), mk(k2), mk(k3), mk(k4)

    # Case 1: N multiple of the lane-pack (4) but not of the tile — exercises the
    # zero-pad / zero-copy path plus a ragged final grid block.  Exact f32 MXU.
    N1 = 200
    xi1, xj1, e1, v1 = make_inputs(kx, N1)
    ref1 = gate_diff_ref(xi1, xj1, e1, v1, weight_t, bias)
    out1 = jax.block_until_ready(gate_diff(xi1, xj1, e1, v1, w_bd, b2d,
                                           mxu_bf16=False))
    assert out1.shape == (N1, out_size)
    assert jnp.allclose(out1, ref1, atol=1e-5, rtol=1e-5)

    # Case 2: same data, default bf16-operand MXU path (f32 accumulate).
    out2 = jax.block_until_ready(gate_diff(xi1, xj1, e1, v1, w_bd, b2d))
    assert jnp.allclose(out2, ref1, atol=2e-2, rtol=2e-2)

    # Case 3: N not a multiple of 4 — exercises the minimal (<=3 row) pad path.
    N3 = 203
    xi3, xj3, e3, v3 = make_inputs(jax.random.PRNGKey(1), N3)
    ref3 = gate_diff_ref(xi3, xj3, e3, v3, weight_t, bias)
    out3 = jax.block_until_ready(gate_diff(xi3, xj3, e3, v3, w_bd, b2d,
                                           mxu_bf16=False))
    assert out3.shape == (N3, out_size)
    assert jnp.allclose(out3, ref3, atol=1e-5, rtol=1e-5)

    # Case 4: inputs already stored as bf16 upstream (no wrapper cast pass).
    xib, xjb, eb, vb = make_inputs(jax.random.PRNGKey(2), 160, jnp.bfloat16)
    refb = gate_diff_ref(xib, xjb, eb, vb, weight_t, bias)
    outb = jax.block_until_ready(gate_diff(xib, xjb, eb, vb, w_bd, b2d))
    assert outb.dtype == jnp.bfloat16 and outb.shape == (160, out_size)
    assert jnp.allclose(outb.astype(jnp.float32), refb, atol=6e-2, rtol=6e-2)

    print("KERNEL_OK")
</pallas_src>

<mosaic_0001>
module attributes {stable_mosaic.version = 11 : i64} {
  func.func @gate_diff_kernel(%arg0: i32, %arg1: memref<64x128xf32, #tpu.memory_space<vmem>>, %arg2: memref<64x128xf32, #tpu.memory_space<vmem>>, %arg3: memref<64x128xf32, #tpu.memory_space<vmem>>, %arg4: memref<64x128xf32, #tpu.memory_space<vmem>>, %arg5: memref<128x128xf32, #tpu.memory_space<vmem>>, %arg6: memref<1x128xf32, #tpu.memory_space<vmem>>, %arg7: memref<64x128xf32, #tpu.memory_space<vmem>>) attributes {dimension_semantics = [#tpu.dimension_semantics<parallel>], iteration_bounds = array<i64: 1>, scalar_prefetch = 0 : i64, scratch_operands = 0 : i64, tpu.core_type = #tpu.core_type<tc>, window_params = [{transform_indices = @transform_0, window_bounds = array<i64: 64, 128>}, {transform_indices = @transform_1, window_bounds = array<i64: 64, 128>}, {transform_indices = @transform_2, window_bounds = array<i64: 64, 128>}, {transform_indices = @transform_3, window_bounds = array<i64: 64, 128>}, {pipeline_mode = #tpu.pipeline_mode<synchronous>, transform_indices = @transform_4, window_bounds = array<i64: 128, 128>}, {pipeline_mode = #tpu.pipeline_mode<synchronous>, transform_indices = @transform_5, window_bounds = array<i64: 1, 128>}, {transform_indices = @transform_6, window_bounds = array<i64: 64, 128>}]} {
    %c0 = arith.constant 0 : index
    %c0_0 = arith.constant 0 : index
    %0 = vector.load %arg1[%c0, %c0_0] : memref<64x128xf32, #tpu.memory_space<vmem>>, vector<64x128xf32>
    %c0_1 = arith.constant 0 : index
    %c0_2 = arith.constant 0 : index
    %1 = vector.load %arg2[%c0_1, %c0_2] : memref<64x128xf32, #tpu.memory_space<vmem>>, vector<64x128xf32>
    %c0_3 = arith.constant 0 : index
    %c0_4 = arith.constant 0 : index
    %2 = vector.load %arg3[%c0_3, %c0_4] : memref<64x128xf32, #tpu.memory_space<vmem>>, vector<64x128xf32>
    %c0_5 = arith.constant 0 : index
    %c0_6 = arith.constant 0 : index
    %3 = vector.load %arg4[%c0_5, %c0_6] : memref<64x128xf32, #tpu.memory_space<vmem>>, vector<64x128xf32>
    %4 = arith.addf %1, %2 : vector<64x128xf32>
    %5 = arith.addf %4, %3 : vector<64x128xf32>
    %cst = arith.constant 2.000000e+00 : f32
    %6 = vector.broadcast %cst : f32 to vector<64x128xf32>
    %7 = arith.mulf %6, %0 : vector<64x128xf32>
    %8 = arith.subf %5, %7 : vector<64x128xf32>
    %cst_7 = arith.constant 0.000000e+00 : f32
    %9 = vector.broadcast %cst_7 : f32 to vector<64x128xf32>
    %10 = arith.cmpf ogt, %8, %9 : vector<64x128xf32>
    %cst_8 = arith.constant 0.00999999977 : f32
    %11 = vector.broadcast %cst_8 : f32 to vector<64x128xf32>
    %12 = arith.mulf %11, %8 : vector<64x128xf32>
    %13 = arith.select %10, %8, %12 : vector<64x128xi1>, vector<64x128xf32>
    %c0_9 = arith.constant 0 : index
    %c0_10 = arith.constant 0 : index
    %14 = vector.load %arg5[%c0_9, %c0_10] : memref<128x128xf32, #tpu.memory_space<vmem>>, vector<128x128xf32>
    %cst_11 = arith.constant dense<0.000000e+00> : vector<64x128xf32>
    %15 = tpu.matmul %13, %14, %cst_11 {dimension_numbers = #tpu.dot_dimension_numbers<[1], [0], [0], [1], [0, 0, 1, 1], [], []>} : vector<64x128xf32>, vector<128x128xf32>, vector<64x128xf32> -> vector<64x128xf32>
    %c0_12 = arith.constant 0 : index
    %c0_13 = arith.constant 0 : index
    %16 = vector.load %arg6[%c0_12, %c0_13] : memref<1x128xf32, #tpu.memory_space<vmem>>, vector<1x128xf32>
    %17 = vector.broadcast %16 : vector<1x128xf32> to vector<64x128xf32>
    %18 = arith.addf %15, %17 : vector<64x128xf32>
    %19 = math.tanh %18 : vector<64x128xf32>
    %c0_14 = arith.constant 0 : index
    %c0_15 = arith.constant 0 : index
    %20 = vector.load %arg7[%c0_14, %c0_15] : memref<64x128xf32, #tpu.memory_space<vmem>>, vector<64x128xf32>
    tpu.vector_store %arg7[%c0_14, %c0_15], %19 {strides = array<i32>} : memref<64x128xf32, #tpu.memory_space<vmem>>, vector<64x128xf32>,
    return
  }
  func.func @transform_0(%arg0: i32) -> (i32, i32) {
    %c0_i32 = arith.constant 0 : i32
    %c0_i32_0 = arith.constant 0 : i32
    return %arg0, %c0_i32 : i32, i32
  }
  func.func @transform_1(%arg0: i32) -> (i32, i32) {
    %c0_i32 = arith.constant 0 : i32
    %c0_i32_0 = arith.constant 0 : i32
    return %arg0, %c0_i32 : i32, i32
  }
  func.func @transform_2(%arg0: i32) -> (i32, i32) {
    %c0_i32 = arith.constant 0 : i32
    %c0_i32_0 = arith.constant 0 : i32
    return %arg0, %c0_i32 : i32, i32
  }
  func.func @transform_3(%arg0: i32) -> (i32, i32) {
    %c0_i32 = arith.constant 0 : i32
    %c0_i32_0 = arith.constant 0 : i32
    return %arg0, %c0_i32 : i32, i32
  }
  func.func @transform_4(%arg0: i32) -> (i32, i32) {
    %c0_i32 = arith.constant 0 : i32
    %c0_i32_0 = arith.constant 0 : i32
    %c0_i32_1 = arith.constant 0 : i32
    return %c0_i32, %c0_i32_0 : i32, i32
  }
  func.func @transform_5(%arg0: i32) -> (i32, i32) {
    %c0_i32 = arith.constant 0 : i32
    %c0_i32_0 = arith.constant 0 : i32
    %c0_i32_1 = arith.constant 0 : i32
    return %c0_i32, %c0_i32_0 : i32, i32
  }
  func.func @transform_6(%arg0: i32) -> (i32, i32) {
    %c0_i32 = arith.constant 0 : i32
    %c0_i32_0 = arith.constant 0 : i32
    return %arg0, %c0_i32 : i32, i32
  }
}

</mosaic_0001>

<llo_original>
// kernel: gate_diff.1
$region0: #{gate_diff.1}
  #allocation0 [shape = 'u32[]', space=smem, size = 0x4, offset = 0x4, fixed_abs, tag = 'smem constant byte address 0x4 - core index']
  #allocation1 [shape = 'u32[144,128]{1,0:T(1,128)}', space=vmem, size = 0x12000, scoped, tag = 'internal scratch']
  %s0 = inlined_call_operand.vmem [shape: f32[50,128], index: 0, kind: input, shape index: {}]
  %s1 = inlined_call_operand.vmem [shape: f32[50,128], index: 1, kind: input, shape index: {}]
  %s2 = inlined_call_operand.vmem [shape: f32[50,128], index: 2, kind: input, shape index: {}]
  %s3 = inlined_call_operand.vmem [shape: f32[50,128], index: 3, kind: input, shape index: {}]
  %s4 = inlined_call_operand.vmem [shape: f32[128,128], index: 4, kind: input, shape index: {}]
  %s5 = inlined_call_operand.vmem [shape: f32[1,128], index: 5, kind: input, shape index: {}]
  %s6 = inlined_call_operand.vmem [shape: f32[50,128], index: 6, kind: output, shape index: {}]
  %s7 = sld [smem:[#allocation0]]
  $region68: #{gate_diff.1} parent=0
    _
  %s9 = ssub.s32 1, %s7
  %s10 = scalar_select 0, %s9, %s7
  $region1: #{gate_diff.1} parent=0
    #allocation2 [shape = 'u8[32768]{0}', space=vmem, size = 0x8000, scoped, tag = 'output window, operand 0, single buffered']
    // Predicated region
    $region2: #{gate_diff.1} parent=1 // pred_check
      _
    $region3: #{gate_diff.1} parent=1 // pred_check_branch
      %12 = sbr.rel (0) target = $region5
    $region4: #{gate_diff.1} parent=1 // pred_region
      _
    $region5: #{gate_diff.1} parent=1 // pred_fallthru
      _
    // Predicated region
    $region6: #{gate_diff.1} parent=1 // pred_check
      _
    $region7: #{gate_diff.1} parent=1 // pred_check_branch
      %14 = sbr.rel (0) target = $region9
    $region8: #{gate_diff.1} parent=1 // pred_region
      _
    $region9: #{gate_diff.1} parent=1 // pred_fallthru
      _
    // Predicated region
    $region10: #{gate_diff.1} parent=1 // pred_check
      _
    $region11: #{gate_diff.1} parent=1 // pred_check_branch
      %16 = sbr.rel (0) target = $region13
    $region12: #{gate_diff.1} parent=1 // pred_region
      _
    $region13: #{gate_diff.1} parent=1 // pred_fallthru
      _
    // Predicated region
    $region14: #{gate_diff.1} parent=1 // pred_check
      _
    $region15: #{gate_diff.1} parent=1 // pred_check_branch
      %18 = sbr.rel (0) target = $region17
    $region16: #{gate_diff.1} parent=1 // pred_region
      _
    $region17: #{gate_diff.1} parent=1 // pred_fallthru
      _
    // Predicated region
    $region18: #{gate_diff.1} parent=1 // pred_check
      _
    $region19: #{gate_diff.1} parent=1 // pred_check_branch
      %20 = sbr.rel (0) target = $region21
    $region20: #{gate_diff.1} parent=1 // pred_region
      _
    $region21: #{gate_diff.1} parent=1 // pred_fallthru
      _
    // Predicated region
    $region22: #{gate_diff.1} parent=1 // pred_check
      _
    $region23: #{gate_diff.1} parent=1 // pred_check_branch
      %22 = sbr.rel (0) target = $region25
    $region24: #{gate_diff.1} parent=1 // pred_region
      _
    $region25: #{gate_diff.1} parent=1 // pred_fallthru
      _
    %v23 = vld [vmem:[%s0] sm:$0xff]
    %v24 = vld [vmem:[%s0 + $0x8] sm:$0xff]
    %v25 = vld [vmem:[%s0 + $0x10] sm:$0xff]
    %v26 = vld [vmem:[%s0 + $0x18] sm:$0xff]
    %v27 = vld [vmem:[%s0 + $0x20] sm:$0xff]
    %v28 = vld [vmem:[%s0 + $0x28] sm:$0xff]
    %v29 = vld [vmem:[%s0 + $0x30] sm:$0xff]
    %v30 = vld [vmem:[%s0 + $0x38] sm:$0xff]
    %v31 = vld [vmem:[%s1] sm:$0xff]
    %v32 = vld [vmem:[%s1 + $0x8] sm:$0xff]
    %v33 = vld [vmem:[%s1 + $0x10] sm:$0xff]
    %v34 = vld [vmem:[%s1 + $0x18] sm:$0xff]
    %v35 = vld [vmem:[%s1 + $0x20] sm:$0xff]
    %v36 = vld [vmem:[%s1 + $0x28] sm:$0xff]
    %v37 = vld [vmem:[%s1 + $0x30] sm:$0xff]
    %v38 = vld [vmem:[%s1 + $0x38] sm:$0xff]
    %v39 = vld [vmem:[%s2] sm:$0xff]
    %v40 = vld [vmem:[%s2 + $0x8] sm:$0xff]
    %v41 = vld [vmem:[%s2 + $0x10] sm:$0xff]
    %v42 = vld [vmem:[%s2 + $0x18] sm:$0xff]
    %v43 = vld [vmem:[%s2 + $0x20] sm:$0xff]
    %v44 = vld [vmem:[%s2 + $0x28] sm:$0xff]
    %v45 = vld [vmem:[%s2 + $0x30] sm:$0xff]
    %v46 = vld [vmem:[%s2 + $0x38] sm:$0xff]
    %v47 = vld [vmem:[%s3] sm:$0xff]
    %v48 = vld [vmem:[%s3 + $0x8] sm:$0xff]
    %v49 = vld [vmem:[%s3 + $0x10] sm:$0xff]
    %v50 = vld [vmem:[%s3 + $0x18] sm:$0xff]
    %v51 = vld [vmem:[%s3 + $0x20] sm:$0xff]
    %v52 = vld [vmem:[%s3 + $0x28] sm:$0xff]
    %v53 = vld [vmem:[%s3 + $0x30] sm:$0xff]
    %v54 = vld [vmem:[%s3 + $0x38] sm:$0xff]
    %v55 = vadd.f32 %v31, %v39
    %v56 = vadd.f32 %v32, %v40
    %v57 = vadd.f32 %v33, %v41
    %v58 = vadd.f32 %v34, %v42
    %v59 = vadd.f32 %v35, %v43
    %v60 = vadd.f32 %v36, %v44
    %v61 = vadd.f32 %v37, %v45
    %v62 = vadd.f32 %v38, %v46
    %v63 = vadd.f32 %v55, %v47
    %v64 = vadd.f32 %v56, %v48
    %v65 = vadd.f32 %v57, %v49
    %v66 = vadd.f32 %v58, %v50
    %v67 = vadd.f32 %v59, %v51
    %v68 = vadd.f32 %v60, %v52
    %v69 = vadd.f32 %v61, %v53
    %v70 = vadd.f32 %v62, %v54
    %v71 = vmul.f32 %v23, 2.0
    %v72 = vmul.f32 %v24, 2.0
    %v73 = vmul.f32 %v25, 2.0
    %v74 = vmul.f32 %v26, 2.0
    %v75 = vmul.f32 %v27, 2.0
    %v76 = vmul.f32 %v28, 2.0
    %v77 = vmul.f32 %v29, 2.0
    %v78 = vmul.f32 %v30, 2.0
    %v79 = vsub.f32 %v63, %v71
    %v80 = vsub.f32 %v64, %v72
    %v81 = vsub.f32 %v65, %v73
    %v82 = vsub.f32 %v66, %v74
    %v83 = vsub.f32 %v67, %v75
    %v84 = vsub.f32 %v68, %v76
    %v85 = vsub.f32 %v69, %v77
    %v86 = vsub.f32 %v70, %v78
    %vm87 = vcmp.gt.f32.partialorder %v79, 0.0
    %vm88 = vcmp.gt.f32.partialorder %v80, 0.0
    %vm89 = vcmp.gt.f32.partialorder %v81, 0.0
    %vm90 = vcmp.gt.f32.partialorder %v82, 0.0
    %vm91 = vcmp.gt.f32.partialorder %v83, 0.0
    %vm92 = vcmp.gt.f32.partialorder %v84, 0.0
    %vm93 = vcmp.gt.f32.partialorder %v85, 0.0
    %vm94 = vcmp.gt.f32.partialorder %v86, 0.0
    %v95 = vmul.f32 %v79, 0.01
    %v96 = vmul.f32 %v80, 0.01
    %v97 = vmul.f32 %v81, 0.01
    %v98 = vmul.f32 %v82, 0.01
    %v99 = vmul.f32 %v83, 0.01
    %v100 = vmul.f32 %v84, 0.01
    %v101 = vmul.f32 %v85, 0.01
    %v102 = vmul.f32 %v86, 0.01
    %v103 = vsel %vm87, %v79, %v95
    %v104 = vsel %vm88, %v80, %v96
    %v105 = vsel %vm89, %v81, %v97
    %v106 = vsel %vm90, %v82, %v98
    %v107 = vsel %vm91, %v83, %v99
    %v108 = vsel %vm92, %v84, %v100
    %v109 = vsel %vm93, %v85, %v101
    %v110 = vsel %vm94, %v86, %v102
    %v111 = vld [vmem:[%s4] sm:$0xff]
    %v112 = vld [vmem:[%s4 + $0x8] sm:$0xff]
    %v113 = vld [vmem:[%s4 + $0x10] sm:$0xff]
    %v114 = vld [vmem:[%s4 + $0x18] sm:$0xff]
    %v115 = vld [vmem:[%s4 + $0x20] sm:$0xff]
    %v116 = vld [vmem:[%s4 + $0x28] sm:$0xff]
    %v117 = vld [vmem:[%s4 + $0x30] sm:$0xff]
    %v118 = vld [vmem:[%s4 + $0x38] sm:$0xff]
    %v119 = vld [vmem:[%s4 + $0x40] sm:$0xff]
    %v120 = vld [vmem:[%s4 + $0x48] sm:$0xff]
    %v121 = vld [vmem:[%s4 + $0x50] sm:$0xff]
    %v122 = vld [vmem:[%s4 + $0x58] sm:$0xff]
    %v123 = vld [vmem:[%s4 + $0x60] sm:$0xff]
    %v124 = vld [vmem:[%s4 + $0x68] sm:$0xff]
    %v125 = vld [vmem:[%s4 + $0x70] sm:$0xff]
    %v126 = vld [vmem:[%s4 + $0x78] sm:$0xff]
    %v127 = vld [vmem:[%s5] sm:$0x1]
    %v129 = vlaneseq
    %v130 = vshrl.u32 %v129, 7
    %v131 = vsub.s32 0, %v130
    %v132 = vrot.slane %v127, %v131
    %134 = vmatprep.subr.mxu0 0.0
    %135 = vmatpush1.msra.mxu0 %v111
    %136 = vmatprep.subr.mxu0 0.0
    %137 = vmatpush1.msra.mxu0 %v112
    %138 = vmatprep.subr.mxu0 0.0
    %139 = vmatpush1.msra.mxu0 %v113
    %140 = vmatprep.subr.mxu0 0.0
    %141 = vmatpush1.msra.mxu0 %v114
    %142 = vmatprep.subr.mxu0 0.0
    %143 = vmatpush1.msra.mxu0 %v115
    %144 = vmatprep.subr.mxu0 0.0
    %145 = vmatpush1.msra.mxu0 %v116
    %146 = vmatprep.subr.mxu0 0.0
    %147 = vmatpush1.msra.mxu0 %v117
    %148 = vmatprep.subr.mxu0 0.0
    %149 = vmatpush1.msra.mxu0 %v118
    %150 = vmatprep.subr.mxu0 0.0
    %151 = vmatpush1.msra.mxu0 %v119
    %152 = vmatprep.subr.mxu0 0.0
    %153 = vmatpush1.msra.mxu0 %v120
    %154 = vmatprep.subr.mxu0 0.0
    %155 = vmatpush1.msra.mxu0 %v121
    %156 = vmatprep.subr.mxu0 0.0
    %157 = vmatpush1.msra.mxu0 %v122
    %158 = vmatprep.subr.mxu0 0.0
    %159 = vmatpush1.msra.mxu0 %v123
    %160 = vmatprep.subr.mxu0 0.0
    %161 = vmatpush1.msra.mxu0 %v124
    %162 = vmatprep.subr.mxu0 0.0
    %163 = vmatpush1.msra.mxu0 %v125
    %164 = vmatprep.subr.mxu0 0.0
    %165 = vmatpush1.msra.mxu0 %v126
    %166 = vmatprep.subr.mxu0 0.0
    %167 = vmatpush1.msra.mxu0 0.0
    %168 = vmatprep.subr.mxu0 0.0
    %169 = vmatpush1.msra.mxu0 0.0
    %170 = vmatprep.subr.mxu0 0.0
    %171 = vmatpush1.msra.mxu0 0.0
    %172 = vmatprep.subr.mxu0 0.0
    %173 = vmatpush1.msra.mxu0 0.0
    %174 = vmatprep.subr.mxu0 0.0
    %175 = vmatpush1.msra.mxu0 0.0
    %176 = vmatprep.subr.mxu0 0.0
    %177 = vmatpush1.msra.mxu0 0.0
    %178 = vmatprep.subr.mxu0 0.0
    %179 = vmatpush1.msra.mxu0 0.0
    %180 = vmatprep.subr.mxu0 0.0
    %181 = vmatpush1.msra.mxu0 0.0
    %182 = vmatprep.subr.mxu0 0.0
    %183 = vmatpush1.msra.mxu0 0.0
    %184 = vmatprep.subr.mxu0 0.0
    %185 = vmatpush1.msra.mxu0 0.0
    %186 = vmatprep.subr.mxu0 0.0
    %187 = vmatpush1.msra.mxu0 0.0
    %188 = vmatprep.subr.mxu0 0.0
    %189 = vmatpush1.msra.mxu0 0.0
    %190 = vmatprep.subr.mxu0 0.0
    %191 = vmatpush1.msra.mxu0 0.0
    %192 = vmatprep.subr.mxu0 0.0
    %193 = vmatpush1.msra.mxu0 0.0
    %194 = vmatprep.subr.mxu0 0.0
    %195 = vmatpush1.msra.mxu0 0.0
    %196 = vmatprep.subr.mxu0 0.0
    %197 = vmatpush1.msra.mxu0 0.0
    %198 = vmatprep.mubr.f32.mxu0 0.0
    %199 = vmatmul.mubr.f32.gmra.mrb[0].mxu0 %v103
    %v200 = vpop.f32.mrb[0].mxu0
    %v201 = vadd.f32 %v132, %v200
    %v202 = vpop.f32.mrb[0].mxu0
    %203 = vmatprep.mubr.f32.mxu0 0.0
    %204 = vmatmul.mubr.f32.gmra.mrb[0].mxu0 %v104
    %v205 = vpop.f32.mrb[0].mxu0
    %v206 = vadd.f32 %v132, %v205
    %v207 = vpop.f32.mrb[0].mxu0
    %208 = vmatprep.mubr.f32.mxu0 0.0
    %209 = vmatmul.mubr.f32.gmra.mrb[0].mxu0 %v105
    %v210 = vpop.f32.mrb[0].mxu0
    %v211 = vadd.f32 %v132, %v210
    %v212 = vpop.f32.mrb[0].mxu0
    %213 = vmatprep.mubr.f32.mxu0 0.0
    %214 = vmatmul.mubr.f32.gmra.mrb[0].mxu0 %v106
    %v215 = vpop.f32.mrb[0].mxu0
    %v216 = vadd.f32 %v132, %v215
    %v217 = vpop.f32.mrb[0].mxu0
    %218 = vmatprep.mubr.f32.mxu0 0.0
    %219 = vmatmul.mubr.f32.gmra.mrb[0].mxu0 %v107
    %v220 = vpop.f32.mrb[0].mxu0
    %v221 = vadd.f32 %v132, %v220
    %v222 = vpop.f32.mrb[0].mxu0
    %223 = vmatprep.mubr.f32.mxu0 0.0
    %224 = vmatmul.mubr.f32.gmra.mrb[0].mxu0 %v108
    %v225 = vpop.f32.mrb[0].mxu0
    %v226 = vadd.f32 %v132, %v225
    %v227 = vpop.f32.mrb[0].mxu0
    %228 = vmatprep.mubr.f32.mxu0 0.0
    %229 = vmatmul.mubr.f32.gmra.mrb[0].mxu0 %v109
    %v230 = vpop.f32.mrb[0].mxu0
    %v231 = vadd.f32 %v132, %v230
    %v232 = vpop.f32.mrb[0].mxu0
    %233 = vmatprep.mubr.f32.mxu0 0.0
    %234 = vmatmul.mubr.f32.gmra.mrb[0].mxu0 %v110
    %v235 = vpop.f32.mrb[0].mxu0
    %v236 = vadd.f32 %v132, %v235
    %v237 = vpop.f32.mrb[0].mxu0
    %238 = vdwg.mxu0
    %v239 = vtanh.pop %v201
    %v240 = vtanh.pop %v206
    %v241 = vtanh.pop %v211
    %v242 = vtanh.pop %v216
    %v243 = vtanh.pop %v221
    %v244 = vtanh.pop %v226
    %v245 = vtanh.pop %v231
    %v246 = vtanh.pop %v236
    %247 = vst [vmem:[#allocation2] sm:$0xff] %v239
    %248 = vst [vmem:[#allocation2 + $0x8] sm:$0xff] %v240
    %249 = vst [vmem:[#allocation2 + $0x10] sm:$0xff] %v241
    %250 = vst [vmem:[#allocation2 + $0x18] sm:$0xff] %v242
    %251 = vst [vmem:[#allocation2 + $0x20] sm:$0xff] %v243
    %252 = vst [vmem:[#allocation2 + $0x28] sm:$0xff] %v244
    %253 = vst [vmem:[#allocation2 + $0x30] sm:$0xff] %v245
    %254 = vst [vmem:[#allocation2 + $0x38] sm:$0xff] %v246
    // Predicated region
    $region26: #{gate_diff.1} parent=1 // pred_check
      _
    $region27: #{gate_diff.1} parent=1 // pred_check_branch
      %256 = sbr.rel (0) target = $region29
    $region28: #{gate_diff.1} parent=1 // pred_region
      // Predicated region
      $region30: #{gate_diff.1} parent=28 // pred_check
        _
      $region31: #{gate_diff.1} parent=28 // pred_check_branch
        %258 = sbr.rel (0) target = $region33
      $region32: #{gate_diff.1} parent=28 // pred_region
        // Predicated region
        $region34: #{gate_diff.1} parent=32 // pred_check
          _
        $region35: #{gate_diff.1} parent=32 // pred_check_branch
          %260 = sbr.rel (0) target = $region37
        $region36: #{gate_diff.1} parent=32 // pred_region
          // Predicated region
          $region49: #{gate_diff.1} parent=36 // pred_check
            _
          $region50: #{gate_diff.1} parent=36 // pred_check_branch
            %287 = sbr.rel (0) target = $region52
          $region51: #{gate_diff.1} parent=36 // pred_region
            loop: start=0, step=1, limit=1
            $region53: #{gate_diff.1} parent=51 // loop_pre_header
              _
            $region54: #{gate_diff.1} parent=51 // loop_header
              %s289 = sphi 0, %s293
              %p290 = scmp.ge.s32.totalorder %s289, 1
              %s294 = sphi [#allocation2], [#allocation2]
              %s295 = sphi %s6, %s6
            $region55: #{gate_diff.1} parent=51 // loop_header_branch
              %292 = sbr.rel (%p290) target = $region59
            $region56: #{gate_diff.1} parent=51 // loop_body
              %v296 = vld [vmem:[%s294] sm:$0xff]
              %297 = vst [vmem:[%s295] sm:$0xff] %v296
              %v298 = vld [vmem:[%s294 + $0x8] sm:$0xff]
              %299 = vst [vmem:[%s295 + $0x8] sm:$0xff] %v298
              %v300 = vld [vmem:[%s294 + $0x10] sm:$0xff]
              %301 = vst [vmem:[%s295 + $0x10] sm:$0xff] %v300
              %v302 = vld [vmem:[%s294 + $0x18] sm:$0xff]
              %303 = vst [vmem:[%s295 + $0x18] sm:$0xff] %v302
              %v304 = vld [vmem:[%s294 + $0x20] sm:$0xff]
              %305 = vst [vmem:[%s295 + $0x20] sm:$0xff] %v304
              %v306 = vld [vmem:[%s294 + $0x28] sm:$0xff]
              %307 = vst [vmem:[%s295 + $0x28] sm:$0xff] %v306
              %v308 = vld [vmem:[%s294 + $0x30] sm:$0xff]
              %309 = vst [vmem:[%s295 + $0x30] sm:$0xff] %v308
            $region57: #{gate_diff.1} parent=51 // loop_footer
              %s293 = sadd.s32 1, %s289
            $region58: #{gate_diff.1} parent=51 // loop_footer_branch
              %288 = sbr.rel target = $region54
            $region59: #{gate_diff.1} parent=51 // loop_exit
              _
          $region52: #{gate_diff.1} parent=36 // pred_fallthru
            _
          // Predicated region
          $region60: #{gate_diff.1} parent=36 // pred_check
            _
          $region61: #{gate_diff.1} parent=36 // pred_check_branch
            %311 = sbr.rel target = $region63
          $region62: #{gate_diff.1} parent=36 // pred_region
            _
          $region63: #{gate_diff.1} parent=36 // pred_fallthru
            _
        $region37: #{gate_diff.1} parent=32 // pred_fallthru
          _
        // Predicated region
        $region38: #{gate_diff.1} parent=32 // pred_check
          _
        $region39: #{gate_diff.1} parent=32 // pred_check_branch
          %262 = sbr.rel target = $region41
        $region40: #{gate_diff.1} parent=32 // pred_region
          loop: start=0, step=1, limit=1
          $region42: #{gate_diff.1} parent=40 // loop_pre_header
            _
          $region43: #{gate_diff.1} parent=40 // loop_header
            %s265 = sphi 0, %s269
            %p266 = scmp.ge.s32.totalorder %s265, 1
            %s270 = sphi [#allocation2], [#allocation2]
            %s271 = sphi %s6, %s6
          $region44: #{gate_diff.1} parent=40 // loop_header_branch
            %268 = sbr.rel (%p266) target = $region48
          $region45: #{gate_diff.1} parent=40 // loop_body
            %v272 = vld [vmem:[%s270] sm:$0xff]
            %273 = vst [vmem:[%s271] sm:$0xff] %v272
            %v274 = vld [vmem:[%s270 + $0x8] sm:$0xff]
            %275 = vst [vmem:[%s271 + $0x8] sm:$0xff] %v274
            %v276 = vld [vmem:[%s270 + $0x10] sm:$0xff]
            %277 = vst [vmem:[%s271 + $0x10] sm:$0xff] %v276
            %v278 = vld [vmem:[%s270 + $0x18] sm:$0xff]
            %279 = vst [vmem:[%s271 + $0x18] sm:$0xff] %v278
            %v280 = vld [vmem:[%s270 + $0x20] sm:$0xff]
            %281 = vst [vmem:[%s271 + $0x20] sm:$0xff] %v280
            %v282 = vld [vmem:[%s270 + $0x28] sm:$0xff]
            %283 = vst [vmem:[%s271 + $0x28] sm:$0xff] %v282
            %v284 = vld [vmem:[%s270 + $0x30] sm:$0xff]
            %285 = vst [vmem:[%s271 + $0x30] sm:$0xff] %v284
          $region46: #{gate_diff.1} parent=40 // loop_footer
            %s269 = sadd.s32 1, %s265
          $region47: #{gate_diff.1} parent=40 // loop_footer_branch
            %264 = sbr.rel target = $region43
          $region48: #{gate_diff.1} parent=40 // loop_exit
            _
        $region41: #{gate_diff.1} parent=32 // pred_fallthru
          _
      $region33: #{gate_diff.1} parent=28 // pred_fallthru
        _
      %312 = vnop
    $region29: #{gate_diff.1} parent=1 // pred_fallthru
      _
    // Predicated region
    $region64: #{gate_diff.1} parent=1 // pred_check
      _
    $region65: #{gate_diff.1} parent=1 // pred_check_branch
      %314 = sbr.rel (0) target = $region67
    $region66: #{gate_diff.1} parent=1 // pred_region
      _
    $region67: #{gate_diff.1} parent=1 // pred_fallthru
      _

</llo_original>
